<compile_context>
chip_gen: v7x
topology: tpu7x:2x2x1
jax: 0.10.0
libtpu: 0.0.40
codegen_flags: <defaults>
</compile_context>

<pallas_src>
import functools

import jax
import jax.numpy as jnp
from jax.experimental import pallas as pl
from jax.experimental.pallas import tpu as pltpu

_EPS = 1e-6  # F.pairwise_distance default eps (added to the *difference* — PyTorch quirk)


def _triplet_loss_kernel(a_ref, p_ref, n_ref, partial_ref, *, margin, batch,
                         block_rows, groups, feat):
    """One (block_rows, groups*feat) tile -> one partial hinge-loss sum (SMEM scalar)."""
    i = pl.program_id(0)

    # Upcast in-register; inputs may be bf16 in HBM (preferred — halves DMA bytes).
    a = a_ref[...].astype(jnp.float32)
    p = p_ref[...].astype(jnp.float32)
    n = n_ref[...].astype(jnp.float32)

    # pairwise_distance(x1, x2, p=2, eps=1e-6) = ||x1 - x2 + eps||_2 along last dim.
    dp = a - p + _EPS
    dn = a - n + _EPS
    sq_p = dp * dp
    sq_n = dn * dn

    row = jax.lax.broadcasted_iota(jnp.int32, (block_rows, 1), 0)
    base = (i * block_rows + row) * groups  # original-row index of lane-group 0

    total = jnp.float32(0.0)
    # Static unroll over lane groups (groups == 1 unless D was lane-folded).
    # Pure VPU/XLU work; compute slots have huge slack since the kernel is DMA-bound.
    for g in range(groups):
        lo = g * feat
        pos_d = jnp.sqrt(jnp.sum(sq_p[:, lo:lo + feat], axis=-1, keepdims=True))
        neg_d = jnp.sqrt(jnp.sum(sq_n[:, lo:lo + feat], axis=-1, keepdims=True))
        hinge = jnp.maximum(pos_d - neg_d + margin, 0.0)          # (TB, 1)
        # Select (NOT multiplicative) masking: garbage/NaN in padded tail rows is
        # discarded rather than propagated.
        hinge = jnp.where(base + g < batch, hinge, 0.0)
        total = total + jnp.sum(hinge)

    partial_ref[0, 0] = total


def _round_up(x, m):
    return ((x + m - 1) // m) * m


def _sublane_multiple(dtype):
    # f32 -> 8, bf16 -> 16, int8/fp8 -> 32 rows per packed sublane group.
    return max(8, 32 // jnp.dtype(dtype).itemsize)


def _vmem_capacity_bytes():
    try:
        return int(pltpu.get_tpu_info().vmem_capacity_bytes)
    except Exception:
        return 64 << 20  # conservative fallback (v7x per-TC VMEM)


def _choose_block_rows(folded_batch, lane_width, dtype, input_budget_bytes):
    """Largest sublane-aligned batch tile whose 3x double-buffered copies fit the budget.

    Accounts for lane padding (last dim rounded up to 128) and dtype sublane packing.
    No artificial row cap — bigger tiles amortize the ~0.35 us per-grid-step cost.
    """
    itemsize = jnp.dtype(dtype).itemsize
    sub = _sublane_multiple(dtype)
    lane_padded = _round_up(lane_width, 128)
    bytes_per_row = 3 * 2 * lane_padded * itemsize   # 3 inputs x 2 pipeline buffers
    tb = int(input_budget_bytes) // max(bytes_per_row, 1)
    tb = max(sub, (tb // sub) * sub)
    if tb >= folded_batch:
        return folded_batch                          # single full-batch block (always legal)
    return tb


def triplet_loss(anchor, positive, negative, margin=1.0, block_rows=None):
    """Triplet loss (scalar f32). Streaming, batch-tiled Pallas kernel + tiny wrapper reduce."""
    assert anchor.shape == positive.shape == negative.shape
    assert anchor.ndim == 2
    B, D = anchor.shape
    dtype = anchor.dtype

    # Lane folding: if D < 128 with 128 % D == 0 (and B divisible by the fold factor),
    # pack 128//D consecutive rows into one lane-dense 128-wide row.  The reshape is a
    # free contiguous reinterpretation in the wrapper (no extra HBM traffic) and lets
    # tiles grow 128/D x for the same VMEM budget.
    groups = 1
    if D < 128 and D >= 8 and 128 % D == 0 and B % (128 // D) == 0:
        groups = 128 // D
    feat = D
    lane_width = groups * D
    folded_B = B // groups
    if groups > 1:
        anchor = anchor.reshape(folded_B, lane_width)
        positive = positive.reshape(folded_B, lane_width)
        negative = negative.reshape(folded_B, lane_width)

    vmem_cap = _vmem_capacity_bytes()
    sub = _sublane_multiple(dtype)
    if block_rows is None:
        # Generation-aware: spend ~half of physical VMEM on the double-buffered input
        # stream (≈32 MiB on v7x's 64 MiB, ≈64 MiB on v5e/v6e's 128 MiB).
        block_rows = _choose_block_rows(folded_B, lane_width, dtype, vmem_cap // 2)
    block_rows = int(block_rows)
    if block_rows < folded_B:
        block_rows = max(sub, (block_rows // sub) * sub)  # dtype-aware sublane alignment
    block_rows = min(block_rows, folded_B)
    nb = pl.cdiv(folded_B, block_rows)

    # VMEM limit: real (padded) input footprint + headroom, capped well below the
    # physical capacity so output buffers / compiler scratch never OOM.
    itemsize = jnp.dtype(dtype).itemsize
    lane_padded = _round_up(lane_width, 128)
    rows_padded = _round_up(block_rows, sub)
    in_bytes = 3 * 2 * rows_padded * lane_padded * itemsize
    vmem_limit = int(min(max(in_bytes + (4 << 20), 32 << 20), vmem_cap - (16 << 20)))

    kernel = functools.partial(
        _triplet_loss_kernel, margin=float(margin), batch=B,
        block_rows=block_rows, groups=groups, feat=feat)

    partials = pl.pallas_call(
        kernel,
        out_shape=jax.ShapeDtypeStruct((nb, 1), jnp.float32),
        grid=(nb,),
        in_specs=[
            pl.BlockSpec((block_rows, lane_width), lambda i: (i, 0)),
            pl.BlockSpec((block_rows, lane_width), lambda i: (i, 0)),
            pl.BlockSpec((block_rows, lane_width), lambda i: (i, 0)),
        ],
        out_specs=pl.BlockSpec((1, 1), lambda i: (i, 0),
                               memory_space=pltpu.MemorySpace.SMEM),
        compiler_params=pltpu.CompilerParams(
            # Per-block partial sums are independent -> megacore-shardable on v7x;
            # a no-op on single-TC v5e/v6e.
            dimension_semantics=("parallel",),
            vmem_limit_bytes=vmem_limit,
        ),
    )(anchor, positive, negative)

    # Finalize: mean over the *true* batch size (masked tail rows contributed 0).
    return jnp.sum(partials) / B


def triplet_loss_ref(anchor, positive, negative, margin=1.0):
    """Pure-JAX reference mirroring the PyTorch module."""
    pos = jnp.sqrt(jnp.sum((anchor - positive + _EPS) ** 2, axis=-1))
    neg = jnp.sqrt(jnp.sum((anchor - negative + _EPS) ** 2, axis=-1))
    return jnp.mean(jnp.maximum(pos - neg + margin, 0.0))


if __name__ == "__main__":
    keys = jax.random.split(jax.random.PRNGKey(0), 9)

    # Small embedding batch consistent with the module's forward; D=32 exercises the
    # lane-folding path (4 rows packed into each 128-lane row).
    B, D = 8, 32
    anchor = jax.random.normal(keys[0], (B, D), dtype=jnp.float32)
    positive = jax.random.normal(keys[1], (B, D), dtype=jnp.float32)
    negative = jax.random.normal(keys[2], (B, D), dtype=jnp.float32)
    out = jax.block_until_ready(triplet_loss(anchor, positive, negative, margin=1.0))
    ref = triplet_loss_ref(anchor, positive, negative, margin=1.0)
    assert jnp.allclose(out, ref, atol=1e-5, rtol=1e-5), (out, ref)

    # Multi-block + masked-tail, unfolded path (D = 128, B % block_rows != 0).
    B2, D2 = 300, 128
    a2 = jax.random.normal(keys[3], (B2, D2), dtype=jnp.float32)
    p2 = jax.random.normal(keys[4], (B2, D2), dtype=jnp.float32)
    n2 = jax.random.normal(keys[5], (B2, D2), dtype=jnp.float32)
    out2 = jax.block_until_ready(triplet_loss(a2, p2, n2, margin=1.0, block_rows=128))
    ref2 = triplet_loss_ref(a2, p2, n2, margin=1.0)
    assert jnp.allclose(out2, ref2, atol=1e-5, rtol=1e-5), (out2, ref2)

    # Multi-block + masked-tail, folded path (D = 32 -> 4 rows per 128-lane row).
    B3, D3 = 300, 32
    a3 = jax.random.normal(keys[6], (B3, D3), dtype=jnp.float32)
    p3 = jax.random.normal(keys[7], (B3, D3), dtype=jnp.float32)
    n3 = jax.random.normal(keys[8], (B3, D3), dtype=jnp.float32)
    out3 = jax.block_until_ready(triplet_loss(a3, p3, n3, margin=1.0, block_rows=32))
    ref3 = triplet_loss_ref(a3, p3, n3, margin=1.0)
    assert jnp.allclose(out3, ref3, atol=1e-5, rtol=1e-5), (out3, ref3)

    print("KERNEL_OK")
</pallas_src>

<mosaic_0001>
module attributes {stable_mosaic.version = 11 : i64} {
  func.func @_triplet_loss_kernel(%arg0: i32, %arg1: memref<2x128xf32, #tpu.memory_space<vmem>>, %arg2: memref<2x128xf32, #tpu.memory_space<vmem>>, %arg3: memref<2x128xf32, #tpu.memory_space<vmem>>, %arg4: memref<1x1xf32, #tpu.memory_space<smem>>) attributes {dimension_semantics = [#tpu.dimension_semantics<parallel>], iteration_bounds = array<i64: 1>, scalar_prefetch = 0 : i64, scratch_operands = 0 : i64, tpu.core_type = #tpu.core_type<tc>, window_params = [{transform_indices = @transform_0, window_bounds = array<i64: 2, 128>}, {transform_indices = @transform_1, window_bounds = array<i64: 2, 128>}, {transform_indices = @transform_2, window_bounds = array<i64: 2, 128>}, {transform_indices = @transform_3, window_bounds = array<i64: 1, 1>}]} {
    %c0 = arith.constant 0 : index
    %c0_0 = arith.constant 0 : index
    %0 = vector.load %arg1[%c0, %c0_0] : memref<2x128xf32, #tpu.memory_space<vmem>>, vector<2x128xf32>
    %c0_1 = arith.constant 0 : index
    %c0_2 = arith.constant 0 : index
    %1 = vector.load %arg2[%c0_1, %c0_2] : memref<2x128xf32, #tpu.memory_space<vmem>>, vector<2x128xf32>
    %c0_3 = arith.constant 0 : index
    %c0_4 = arith.constant 0 : index
    %2 = vector.load %arg3[%c0_3, %c0_4] : memref<2x128xf32, #tpu.memory_space<vmem>>, vector<2x128xf32>
    %3 = arith.subf %0, %1 : vector<2x128xf32>
    %cst = arith.constant 9.99999997E-7 : f32
    %4 = vector.broadcast %cst : f32 to vector<2x128xf32>
    %5 = arith.addf %3, %4 : vector<2x128xf32>
    %6 = arith.subf %0, %2 : vector<2x128xf32>
    %cst_5 = arith.constant 9.99999997E-7 : f32
    %7 = vector.broadcast %cst_5 : f32 to vector<2x128xf32>
    %8 = arith.addf %6, %7 : vector<2x128xf32>
    %9 = arith.mulf %5, %5 : vector<2x128xf32>
    %10 = arith.mulf %8, %8 : vector<2x128xf32>
    %11 = tpu.iota {dimensions = array<i32: 0>} : vector<2x1xi32>
    %c2_i32 = arith.constant 2 : i32
    %12 = arith.muli %arg0, %c2_i32 : i32
    %13 = vector.broadcast %12 : i32 to vector<2x1xi32>
    %14 = arith.addi %13, %11 : vector<2x1xi32>
    %c4_i32 = arith.constant 4 : i32
    %15 = vector.broadcast %c4_i32 : i32 to vector<2x1xi32>
    %16 = arith.muli %14, %15 : vector<2x1xi32>
    %17 = vector.extract_strided_slice %9 {offsets = [0, 0], sizes = [2, 32], strides = [1, 1]} : vector<2x128xf32> to vector<2x32xf32>
    %cst_6 = arith.constant dense<0.000000e+00> : vector<2xf32>
    %18 = vector.multi_reduction <add>, %17, %cst_6 [1] : vector<2x32xf32> to vector<2xf32>
    %19 = vector.shape_cast %18 : vector<2xf32> to vector<2x1xf32>
    %20 = math.sqrt %19 : vector<2x1xf32>
    %21 = vector.extract_strided_slice %10 {offsets = [0, 0], sizes = [2, 32], strides = [1, 1]} : vector<2x128xf32> to vector<2x32xf32>
    %cst_7 = arith.constant dense<0.000000e+00> : vector<2xf32>
    %22 = vector.multi_reduction <add>, %21, %cst_7 [1] : vector<2x32xf32> to vector<2xf32>
    %23 = vector.shape_cast %22 : vector<2xf32> to vector<2x1xf32>
    %24 = math.sqrt %23 : vector<2x1xf32>
    %25 = arith.subf %20, %24 : vector<2x1xf32>
    %cst_8 = arith.constant 1.000000e+00 : f32
    %26 = vector.broadcast %cst_8 : f32 to vector<2x1xf32>
    %27 = arith.addf %25, %26 : vector<2x1xf32>
    %cst_9 = arith.constant 0.000000e+00 : f32
    %28 = vector.broadcast %cst_9 : f32 to vector<2x1xf32>
    %29 = arith.maximumf %27, %28 : vector<2x1xf32>
    %c0_i32 = arith.constant 0 : i32
    %30 = vector.broadcast %c0_i32 : i32 to vector<2x1xi32>
    %31 = arith.addi %16, %30 : vector<2x1xi32>
    %c8_i32 = arith.constant 8 : i32
    %32 = vector.broadcast %c8_i32 : i32 to vector<2x1xi32>
    %33 = arith.cmpi slt, %31, %32 : vector<2x1xi32>
    %cst_10 = arith.constant 0.000000e+00 : f32
    %34 = vector.broadcast %cst_10 : f32 to vector<2x1xf32>
    %35 = arith.select %33, %29, %34 : vector<2x1xi1>, vector<2x1xf32>
    %36 = vector.shape_cast %35 : vector<2x1xf32> to vector<1x2x1xf32>
    %cst_11 = arith.constant dense<0.000000e+00> : vector<1xf32>
    %37 = vector.multi_reduction <add>, %36, %cst_11 [1, 2] : vector<1x2x1xf32> to vector<1xf32>
    %38 = vector.shape_cast %37 : vector<1xf32> to vector<1x1x1xf32>
    %39 = vector.extract %38[0, 0, 0] : f32 from vector<1x1x1xf32>
    %cst_12 = arith.constant 0.000000e+00 : f32
    %40 = arith.addf %cst_12, %39 : f32
    %41 = vector.extract_strided_slice %9 {offsets = [0, 32], sizes = [2, 32], strides = [1, 1]} : vector<2x128xf32> to vector<2x32xf32>
    %cst_13 = arith.constant dense<0.000000e+00> : vector<2xf32>
    %42 = vector.multi_reduction <add>, %41, %cst_13 [1] : vector<2x32xf32> to vector<2xf32>
    %43 = vector.shape_cast %42 : vector<2xf32> to vector<2x1xf32>
    %44 = math.sqrt %43 : vector<2x1xf32>
    %45 = vector.extract_strided_slice %10 {offsets = [0, 32], sizes = [2, 32], strides = [1, 1]} : vector<2x128xf32> to vector<2x32xf32>
    %cst_14 = arith.constant dense<0.000000e+00> : vector<2xf32>
    %46 = vector.multi_reduction <add>, %45, %cst_14 [1] : vector<2x32xf32> to vector<2xf32>
    %47 = vector.shape_cast %46 : vector<2xf32> to vector<2x1xf32>
    %48 = math.sqrt %47 : vector<2x1xf32>
    %49 = arith.subf %44, %48 : vector<2x1xf32>
    %cst_15 = arith.constant 1.000000e+00 : f32
    %50 = vector.broadcast %cst_15 : f32 to vector<2x1xf32>
    %51 = arith.addf %49, %50 : vector<2x1xf32>
    %cst_16 = arith.constant 0.000000e+00 : f32
    %52 = vector.broadcast %cst_16 : f32 to vector<2x1xf32>
    %53 = arith.maximumf %51, %52 : vector<2x1xf32>
    %c1_i32 = arith.constant 1 : i32
    %54 = vector.broadcast %c1_i32 : i32 to vector<2x1xi32>
    %55 = arith.addi %16, %54 : vector<2x1xi32>
    %c8_i32_17 = arith.constant 8 : i32
    %56 = vector.broadcast %c8_i32_17 : i32 to vector<2x1xi32>
    %57 = arith.cmpi slt, %55, %56 : vector<2x1xi32>
    %cst_18 = arith.constant 0.000000e+00 : f32
    %58 = vector.broadcast %cst_18 : f32 to vector<2x1xf32>
    %59 = arith.select %57, %53, %58 : vector<2x1xi1>, vector<2x1xf32>
    %60 = vector.shape_cast %59 : vector<2x1xf32> to vector<1x2x1xf32>
    %cst_19 = arith.constant dense<0.000000e+00> : vector<1xf32>
    %61 = vector.multi_reduction <add>, %60, %cst_19 [1, 2] : vector<1x2x1xf32> to vector<1xf32>
    %62 = vector.shape_cast %61 : vector<1xf32> to vector<1x1x1xf32>
    %63 = vector.extract %62[0, 0, 0] : f32 from vector<1x1x1xf32>
    %64 = arith.addf %40, %63 : f32
    %65 = vector.extract_strided_slice %9 {offsets = [0, 64], sizes = [2, 32], strides = [1, 1]} : vector<2x128xf32> to vector<2x32xf32>
    %cst_20 = arith.constant dense<0.000000e+00> : vector<2xf32>
    %66 = vector.multi_reduction <add>, %65, %cst_20 [1] : vector<2x32xf32> to vector<2xf32>
    %67 = vector.shape_cast %66 : vector<2xf32> to vector<2x1xf32>
    %68 = math.sqrt %67 : vector<2x1xf32>
    %69 = vector.extract_strided_slice %10 {offsets = [0, 64], sizes = [2, 32], strides = [1, 1]} : vector<2x128xf32> to vector<2x32xf32>
    %cst_21 = arith.constant dense<0.000000e+00> : vector<2xf32>
    %70 = vector.multi_reduction <add>, %69, %cst_21 [1] : vector<2x32xf32> to vector<2xf32>
    %71 = vector.shape_cast %70 : vector<2xf32> to vector<2x1xf32>
    %72 = math.sqrt %71 : vector<2x1xf32>
    %73 = arith.subf %68, %72 : vector<2x1xf32>
    %cst_22 = arith.constant 1.000000e+00 : f32
    %74 = vector.broadcast %cst_22 : f32 to vector<2x1xf32>
    %75 = arith.addf %73, %74 : vector<2x1xf32>
    %cst_23 = arith.constant 0.000000e+00 : f32
    %76 = vector.broadcast %cst_23 : f32 to vector<2x1xf32>
    %77 = arith.maximumf %75, %76 : vector<2x1xf32>
    %c2_i32_24 = arith.constant 2 : i32
    %78 = vector.broadcast %c2_i32_24 : i32 to vector<2x1xi32>
    %79 = arith.addi %16, %78 : vector<2x1xi32>
    %c8_i32_25 = arith.constant 8 : i32
    %80 = vector.broadcast %c8_i32_25 : i32 to vector<2x1xi32>
    %81 = arith.cmpi slt, %79, %80 : vector<2x1xi32>
    %cst_26 = arith.constant 0.000000e+00 : f32
    %82 = vector.broadcast %cst_26 : f32 to vector<2x1xf32>
    %83 = arith.select %81, %77, %82 : vector<2x1xi1>, vector<2x1xf32>
    %84 = vector.shape_cast %83 : vector<2x1xf32> to vector<1x2x1xf32>
    %cst_27 = arith.constant dense<0.000000e+00> : vector<1xf32>
    %85 = vector.multi_reduction <add>, %84, %cst_27 [1, 2] : vector<1x2x1xf32> to vector<1xf32>
    %86 = vector.shape_cast %85 : vector<1xf32> to vector<1x1x1xf32>
    %87 = vector.extract %86[0, 0, 0] : f32 from vector<1x1x1xf32>
    %88 = arith.addf %64, %87 : f32
    %89 = vector.extract_strided_slice %9 {offsets = [0, 96], sizes = [2, 32], strides = [1, 1]} : vector<2x128xf32> to vector<2x32xf32>
    %cst_28 = arith.constant dense<0.000000e+00> : vector<2xf32>
    %90 = vector.multi_reduction <add>, %89, %cst_28 [1] : vector<2x32xf32> to vector<2xf32>
    %91 = vector.shape_cast %90 : vector<2xf32> to vector<2x1xf32>
    %92 = math.sqrt %91 : vector<2x1xf32>
    %93 = vector.extract_strided_slice %10 {offsets = [0, 96], sizes = [2, 32], strides = [1, 1]} : vector<2x128xf32> to vector<2x32xf32>
    %cst_29 = arith.constant dense<0.000000e+00> : vector<2xf32>
    %94 = vector.multi_reduction <add>, %93, %cst_29 [1] : vector<2x32xf32> to vector<2xf32>
    %95 = vector.shape_cast %94 : vector<2xf32> to vector<2x1xf32>
    %96 = math.sqrt %95 : vector<2x1xf32>
    %97 = arith.subf %92, %96 : vector<2x1xf32>
    %cst_30 = arith.constant 1.000000e+00 : f32
    %98 = vector.broadcast %cst_30 : f32 to vector<2x1xf32>
    %99 = arith.addf %97, %98 : vector<2x1xf32>
    %cst_31 = arith.constant 0.000000e+00 : f32
    %100 = vector.broadcast %cst_31 : f32 to vector<2x1xf32>
    %101 = arith.maximumf %99, %100 : vector<2x1xf32>
    %c3_i32 = arith.constant 3 : i32
    %102 = vector.broadcast %c3_i32 : i32 to vector<2x1xi32>
    %103 = arith.addi %16, %102 : vector<2x1xi32>
    %c8_i32_32 = arith.constant 8 : i32
    %104 = vector.broadcast %c8_i32_32 : i32 to vector<2x1xi32>
    %105 = arith.cmpi slt, %103, %104 : vector<2x1xi32>
    %cst_33 = arith.constant 0.000000e+00 : f32
    %106 = vector.broadcast %cst_33 : f32 to vector<2x1xf32>
    %107 = arith.select %105, %101, %106 : vector<2x1xi1>, vector<2x1xf32>
    %108 = vector.shape_cast %107 : vector<2x1xf32> to vector<1x2x1xf32>
    %cst_34 = arith.constant dense<0.000000e+00> : vector<1xf32>
    %109 = vector.multi_reduction <add>, %108, %cst_34 [1, 2] : vector<1x2x1xf32> to vector<1xf32>
    %110 = vector.shape_cast %109 : vector<1xf32> to vector<1x1x1xf32>
    %111 = vector.extract %110[0, 0, 0] : f32 from vector<1x1x1xf32>
    %112 = arith.addf %88, %111 : f32
    %c0_35 = arith.constant 0 : index
    %c0_36 = arith.constant 0 : index
    %113 = memref.load %arg4[%c0_35, %c0_36] : memref<1x1xf32, #tpu.memory_space<smem>>
    memref.store %112, %arg4[%c0_35, %c0_36] : memref<1x1xf32, #tpu.memory_space<smem>>
    return
  }
  func.func @transform_0(%arg0: i32) -> (i32, i32) {
    %c0_i32 = arith.constant 0 : i32
    %c0_i32_0 = arith.constant 0 : i32
    return %arg0, %c0_i32 : i32, i32
  }
  func.func @transform_1(%arg0: i32) -> (i32, i32) {
    %c0_i32 = arith.constant 0 : i32
    %c0_i32_0 = arith.constant 0 : i32
    return %arg0, %c0_i32 : i32, i32
  }
  func.func @transform_2(%arg0: i32) -> (i32, i32) {
    %c0_i32 = arith.constant 0 : i32
    %c0_i32_0 = arith.constant 0 : i32
    return %arg0, %c0_i32 : i32, i32
  }
  func.func @transform_3(%arg0: i32) -> (i32, i32) {
    %c0_i32 = arith.constant 0 : i32
    %c0_i32_0 = arith.constant 0 : i32
    return %arg0, %c0_i32 : i32, i32
  }
}

</mosaic_0001>

<llo_original>
// kernel: tpu_custom_call.1
$region0: #{tpu_custom_call.1}
  #allocation0 [shape = 'u32[]', space=smem, size = 0x4, offset = 0x4, fixed_abs, tag = 'smem constant byte address 0x4 - core index']
  #allocation1 [shape = 'u32[144,128]{1,0:T(1,128)}', space=vmem, size = 0x12000, scoped, tag = 'internal scratch']
  %s0 = inlined_call_operand.hbm [shape: f32[2,128], index: 0, kind: input, shape index: {}]
  %s1 = inlined_call_operand.vmem [shape: f32[2,128], index: 1, kind: input, shape index: {}]
  %s2 = inlined_call_operand.vmem [shape: f32[2,128], index: 2, kind: input, shape index: {}]
  %s3 = inlined_call_operand.hbm [shape: f32[1,1], index: 3, kind: output, shape index: {}]
  %s4 = sld [smem:[#allocation0]]
  $region26: #{tpu_custom_call.1} parent=0
    _
  %s6 = ssub.s32 1, %s4
  %s7 = scalar_select 0, %s6, %s4
  $region1: #{tpu_custom_call.1} parent=0
    #allocation2 [shape = 'u8[1024]{0}', space=vmem, size = 0x400, scoped, tag = 'input window, operand 0, single buffered']
    #allocation3 [shape = 's32[1]{0}', space=sflag, size = 0x4, scoped, tag = 'scoped memory for tpu_custom_call.1']
    #allocation4 [shape = 's32[1]{0}', space=sflag, size = 0x4, scoped, tag = 'scoped memory for tpu_custom_call.1']
    #allocation5 [shape = 'u8[512]{0}', space=smem, size = 0x200, scoped, tag = 'output window, operand 0, single buffered']
    %8 = vsyncpa [#allocation3], 0
    %9 = vsyncpa [#allocation4], 0
    // Predicated region
    $region2: #{tpu_custom_call.1} parent=1 // pred_check
      _
    $region3: #{tpu_custom_call.1} parent=1 // pred_check_branch
      %11 = sbr.rel (0) target = $region5
    $region4: #{tpu_custom_call.1} parent=1 // pred_region
      %s13 = ssub.s32 32, 32
      %14 = vsyncadd [#allocation3], %s13
      %s16 = sshll.u32 [#allocation2], 4
      %s17 = int_to_ptr.vmem [resolvable:$true] %s16
      %19 = dma.hbm_to_vmem [thread:$0]  %s0, 32, %s17, [#allocation3]
    $region5: #{tpu_custom_call.1} parent=1 // pred_fallthru
      _
    // Predicated region
    $region6: #{tpu_custom_call.1} parent=1 // pred_check
      _
    $region7: #{tpu_custom_call.1} parent=1 // pred_check_branch
      %21 = sbr.rel (0) target = $region9
    $region8: #{tpu_custom_call.1} parent=1 // pred_region
      _
    $region9: #{tpu_custom_call.1} parent=1 // pred_fallthru
      _
    // Predicated region
    $region10: #{tpu_custom_call.1} parent=1 // pred_check
      _
    $region11: #{tpu_custom_call.1} parent=1 // pred_check_branch
      %23 = sbr.rel (0) target = $region13
    $region12: #{tpu_custom_call.1} parent=1 // pred_region
      _
    $region13: #{tpu_custom_call.1} parent=1 // pred_fallthru
      _
    // Predicated region
    $region14: #{tpu_custom_call.1} parent=1 // pred_check
      _
    $region15: #{tpu_custom_call.1} parent=1 // pred_check_branch
      %25 = sbr.rel (0) target = $region17
    $region16: #{tpu_custom_call.1} parent=1 // pred_region
      %26 = dma.done [#allocation3], 32
    $region17: #{tpu_custom_call.1} parent=1 // pred_fallthru
      _
    %v27 = vld [vmem:[#allocation2] sm:$0x3]
    %v28 = vld [vmem:[%s1] sm:$0x3]
    %v29 = vld [vmem:[%s2] sm:$0x3]
    %v30 = vsub.f32 %v27, %v28
    %v31 = vadd.f32 %v30, 1e-06
    %v32 = vsub.f32 %v27, %v29
    %v33 = vadd.f32 %v32, 1e-06
    %v34 = vmul.f32 %v31, %v31
    %v35 = vmul.f32 %v33, %v33
    %v36 = vlaneseq
    %v37 = vshrl.u32 %v36, 7
    %s38 = smul.u32 0, 2
    %v39 = vstv %s38
    %v40 = vadd.s32 %v39, %v37
    %v41 = vmul.u32 %v40, 4
    %vm42 = vcmask 254976
    %v43 = vsel %vm42, %v34, 0.0
    %44 = vadd.xlane.f32.xlu0 %v43
    %v45 = vpop.xlane.xlu0 %44
    %v46 = vrsqrt.pop %v45
    %v47 = vmul.f32 %v45, %v46
    %vm48 = vcmp.eq.f32.partialorder %v45, inf
    %v49 = vsel %vm48, %v45, %v47
    %vm50 = vcmp.eq.f32.partialorder %v45, 0.0
    %v51 = vand.u32 %v45, 2147483648
    %v52 = vsel %vm50, %v51, %v49
    %v53 = vsel %vm42, %v35, 0.0
    %54 = vadd.xlane.f32.xlu0 %v53
    %v55 = vpop.xlane.xlu0 %54
    %v56 = vrsqrt.pop %v55
    %v57 = vmul.f32 %v55, %v56
    %vm58 = vcmp.eq.f32.partialorder %v55, inf
    %v59 = vsel %vm58, %v55, %v57
    %vm60 = vcmp.eq.f32.partialorder %v55, 0.0
    %v61 = vand.u32 %v55, 2147483648
    %v62 = vsel %vm60, %v61, %v59
    %v63 = vsub.f32 %v52, %v62
    %v64 = vadd.f32 %v63, 1.0
    %v65 = vmax.f32 %v64, 0.0
    %vm66 = vcmp.lt.s32.totalorder %v41, 8
    %v67 = vsel %vm66, %v65, 0.0
    %vm68 = vcmask 1024
    %v69 = vsel %vm68, %v67, 0.0
    %70 = vadd.xlane.f32.xlu0 %v69
    %v71 = vpop.xlane.xlu0 %70
    %v72 = vrot.slane %v71, 4
    %v73 = vadd.f32 %v71, %v72
    %v74 = vrot.slane %v73, 2
    %v75 = vadd.f32 %v73, %v74
    %v76 = vrot.slane %v75, 1
    %v77 = vadd.f32 %v75, %v76
    %s78 = vtos %v77
    %s79 = sadd.f32 %s78, 0.0
    %81 = vrot.lane.b32.xlu0 %v34, 96
    %v82 = vpop.permute.xlu0 %81
    %v84 = vsel %vm42, %v82, 0.0
    %85 = vadd.xlane.f32.xlu0 %v84
    %v86 = vpop.xlane.xlu0 %85
    %v87 = vrsqrt.pop %v86
    %v88 = vmul.f32 %v86, %v87
    %vm89 = vcmp.eq.f32.partialorder %v86, inf
    %v90 = vsel %vm89, %v86, %v88
    %vm91 = vcmp.eq.f32.partialorder %v86, 0.0
    %v92 = vand.u32 %v86, 2147483648
    %v93 = vsel %vm91, %v92, %v90
    %95 = vrot.lane.b32.xlu0 %v35, 96
    %v96 = vpop.permute.xlu0 %95
    %v98 = vsel %vm42, %v96, 0.0
    %99 = vadd.xlane.f32.xlu0 %v98
    %v100 = vpop.xlane.xlu0 %99
    %v101 = vrsqrt.pop %v100
    %v102 = vmul.f32 %v100, %v101
    %vm103 = vcmp.eq.f32.partialorder %v100, inf
    %v104 = vsel %vm103, %v100, %v102
    %vm105 = vcmp.eq.f32.partialorder %v100, 0.0
    %v106 = vand.u32 %v100, 2147483648
    %v107 = vsel %vm105, %v106, %v104
    %v108 = vsub.f32 %v93, %v107
    %v109 = vadd.f32 %v108, 1.0
    %v110 = vmax.f32 %v109, 0.0
    %v111 = vadd.s32 %v41, 1
    %vm112 = vcmp.lt.s32.totalorder %v111, 8
    %v113 = vsel %vm112, %v110, 0.0
    %v114 = vsel %vm68, %v113, 0.0
    %115 = vadd.xlane.f32.xlu0 %v114
    %v116 = vpop.xlane.xlu0 %115
    %v117 = vrot.slane %v116, 4
    %v118 = vadd.f32 %v116, %v117
    %v119 = vrot.slane %v118, 2
    %v120 = vadd.f32 %v118, %v119
    %v121 = vrot.slane %v120, 1
    %v122 = vadd.f32 %v120, %v121
    %s123 = vtos %v122
    %s124 = sadd.f32 %s79, %s123
    %125 = vrot.lane.b32.xlu0 %v34, 64
    %v126 = vpop.permute.xlu0 %125
    %v128 = vsel %vm42, %v126, 0.0
    %129 = vadd.xlane.f32.xlu0 %v128
    %v130 = vpop.xlane.xlu0 %129
    %v131 = vrsqrt.pop %v130
    %v132 = vmul.f32 %v130, %v131
    %vm133 = vcmp.eq.f32.partialorder %v130, inf
    %v134 = vsel %vm133, %v130, %v132
    %vm135 = vcmp.eq.f32.partialorder %v130, 0.0
    %v136 = vand.u32 %v130, 2147483648
    %v137 = vsel %vm135, %v136, %v134
    %138 = vrot.lane.b32.xlu0 %v35, 64
    %v139 = vpop.permute.xlu0 %138
    %v141 = vsel %vm42, %v139, 0.0
    %142 = vadd.xlane.f32.xlu0 %v141
    %v143 = vpop.xlane.xlu0 %142
    %v144 = vrsqrt.pop %v143
    %v145 = vmul.f32 %v143, %v144
    %vm146 = vcmp.eq.f32.partialorder %v143, inf
    %v147 = vsel %vm146, %v143, %v145
    %vm148 = vcmp.eq.f32.partialorder %v143, 0.0
    %v149 = vand.u32 %v143, 2147483648
    %v150 = vsel %vm148, %v149, %v147
    %v151 = vsub.f32 %v137, %v150
    %v152 = vadd.f32 %v151, 1.0
    %v153 = vmax.f32 %v152, 0.0
    %v154 = vadd.s32 %v41, 2
    %vm155 = vcmp.lt.s32.totalorder %v154, 8
    %v156 = vsel %vm155, %v153, 0.0
    %v157 = vsel %vm68, %v156, 0.0
    %158 = vadd.xlane.f32.xlu0 %v157
    %v159 = vpop.xlane.xlu0 %158
    %v160 = vrot.slane %v159, 4
    %v161 = vadd.f32 %v159, %v160
    %v162 = vrot.slane %v161, 2
    %v163 = vadd.f32 %v161, %v162
    %v164 = vrot.slane %v163, 1
    %v165 = vadd.f32 %v163, %v164
    %s166 = vtos %v165
    %s167 = sadd.f32 %s124, %s166
    %168 = vrot.lane.b32.xlu0 %v34, 32
    %v169 = vpop.permute.xlu0 %168
    %v171 = vsel %vm42, %v169, 0.0
    %172 = vadd.xlane.f32.xlu0 %v171
    %v173 = vpop.xlane.xlu0 %172
    %v174 = vrsqrt.pop %v173
    %v175 = vmul.f32 %v173, %v174
    %vm176 = vcmp.eq.f32.partialorder %v173, inf
    %v177 = vsel %vm176, %v173, %v175
    %vm178 = vcmp.eq.f32.partialorder %v173, 0.0
    %v179 = vand.u32 %v173, 2147483648
    %v180 = vsel %vm178, %v179, %v177
    %181 = vrot.lane.b32.xlu0 %v35, 32
    %v182 = vpop.permute.xlu0 %181
    %v184 = vsel %vm42, %v182, 0.0
    %185 = vadd.xlane.f32.xlu0 %v184
    %v186 = vpop.xlane.xlu0 %185
    %v187 = vrsqrt.pop %v186
    %v188 = vmul.f32 %v186, %v187
    %vm189 = vcmp.eq.f32.partialorder %v186, inf
    %v190 = vsel %vm189, %v186, %v188
    %vm191 = vcmp.eq.f32.partialorder %v186, 0.0
    %v192 = vand.u32 %v186, 2147483648
    %v193 = vsel %vm191, %v192, %v190
    %v194 = vsub.f32 %v180, %v193
    %v195 = vadd.f32 %v194, 1.0
    %v196 = vmax.f32 %v195, 0.0
    %v197 = vadd.s32 %v41, 3
    %vm198 = vcmp.lt.s32.totalorder %v197, 8
    %v199 = vsel %vm198, %v196, 0.0
    %v200 = vsel %vm68, %v199, 0.0
    %201 = vadd.xlane.f32.xlu0 %v200
    %v202 = vpop.xlane.xlu0 %201
    %v203 = vrot.slane %v202, 4
    %v204 = vadd.f32 %v202, %v203
    %v205 = vrot.slane %v204, 2
    %v206 = vadd.f32 %v204, %v205
    %v207 = vrot.slane %v206, 1
    %v208 = vadd.f32 %v206, %v207
    %s209 = vtos %v208
    %s210 = sadd.f32 %s167, %s209
    %s211 = scalar_lea.smem [#allocation5], 0
    %212 = sst [smem:[%s211]] %s210
    // Predicated region
    $region18: #{tpu_custom_call.1} parent=1 // pred_check
      _
    $region19: #{tpu_custom_call.1} parent=1 // pred_check_branch
      %214 = sbr.rel (0) target = $region21
    $region20: #{tpu_custom_call.1} parent=1 // pred_region
      %s216 = ssub.s32 16, 16
      %217 = vsyncadd [#allocation4], %s216
      %220 = dma.smem_to_hbm [#allocation5], 16, %s3, [#allocation4]
    $region21: #{tpu_custom_call.1} parent=1 // pred_fallthru
      _
    // Predicated region
    $region22: #{tpu_custom_call.1} parent=1 // pred_check
      _
    $region23: #{tpu_custom_call.1} parent=1 // pred_check_branch
      %222 = sbr.rel (0) target = $region25
    $region24: #{tpu_custom_call.1} parent=1 // pred_region
      %223 = dma.done [#allocation4], 16
    $region25: #{tpu_custom_call.1} parent=1 // pred_fallthru
      _
    %224 = sfence
    %225 = vsyncpa [#allocation3], 1
    %226 = vsyncpa [#allocation4], 1

</llo_original>
